<compile_context>
chip_gen: v6e
topology: v6e:2x2x1
jax: 0.10.0
libtpu: 0.0.40
codegen_flags: <defaults>
</compile_context>

<pallas_src>
import functools

import jax
import jax.numpy as jnp
from jax.experimental import pallas as pl
from jax.experimental.pallas import tpu as pltpu


_LANES = 128
_ROW_ALIGN = 16          # multiple of 16 -> bf16 (16,128) tiling also satisfied
_CHUNK_ROWS = 256        # rows per inner accumulation step (bounds temporaries)
_SPLIT_ROWS = 2048       # above this, force >=2 blocks (dual-TC sharding)
_MAX_TILE_ROWS = 8192    # 4 MiB f32 / input block; 2 in x 2 buf = 16 MiB


def _round_up(x, m):
    return ((x + m - 1) // m) * m


def _focal_kernel(pred_ref, true_ref, out_ref, *,
                  gamma, alpha, inv_scale, tile_rows, chunk_rows,
                  valid_rows, needs_mask):
    lanes = pred_ref.shape[-1]
    nchunks = tile_rows // chunk_rows
    block_row0 = pl.program_id(0) * tile_rows

    def chunk_sum(r0, acc):
        p = pred_ref[pl.ds(r0, chunk_rows), :].astype(jnp.float32)
        t = true_ref[pl.ds(r0, chunk_rows), :].astype(jnp.float32)

        # One shared exponential for both the stable BCE term and sigmoid.
        e = jnp.exp(-jnp.abs(p))                                  # exp(-|p|)
        # Numerically stable BCE-with-logits (matches torch):
        #   max(p,0) - p*t + log(1 + exp(-|p|))
        bce = jnp.maximum(p, 0.0) - p * t + jnp.log1p(e)
        # sigmoid(p): p>=0 -> 1/(1+e), p<0 -> e/(1+e); approx vrcp (EUP slot)
        # instead of a full f32 divide (reciprocal + Newton refinement).
        inv = pl.reciprocal(1.0 + e, approx=True)
        prob = jnp.where(p >= 0.0, 1.0, e) * inv

        # Algebraically folded blends (constants folded at trace time):
        one_minus_pt = prob + t * (1.0 - 2.0 * prob)              # = 1 - p_t
        alpha_factor = (1.0 - alpha) + t * (2.0 * alpha - 1.0)

        if gamma == 1.5:
            modulating = one_minus_pt * jnp.sqrt(one_minus_pt)    # x**1.5 exact
        elif gamma == 2.0:
            modulating = one_minus_pt * one_minus_pt
        elif gamma == 1.0:
            modulating = one_minus_pt
        elif gamma == 0.0:
            modulating = jnp.ones_like(one_minus_pt)
        else:
            modulating = one_minus_pt ** gamma                    # generic path

        loss = bce * alpha_factor * modulating

        if needs_mask:
            # Zero rows past the logical end of the input (grid-OOB garbage
            # in the last block). valid_rows is static -> no SMEM read.
            row_ids = (block_row0 + r0
                       + jax.lax.broadcasted_iota(jnp.int32, loss.shape, 0))
            loss = jnp.where(row_ids < valid_rows, loss, 0.0)

        # Deferred reduce: fold the sublane-major axis in groups of 8
        # (pure vreg adds); final (8,128)->scalar reduce happens outside.
        partial = jnp.sum(loss.reshape(chunk_rows // 8, 8, lanes), axis=0)
        return acc + partial

    init = jnp.zeros((8, lanes), jnp.float32)
    if nchunks == 1:
        acc = chunk_sum(0, init)
    else:
        acc = jax.lax.fori_loop(
            0, nchunks,
            lambda c, a: chunk_sum(
                pl.multiple_of(c * chunk_rows, chunk_rows), a),
            init)

    # 'mean' scale folded into the kernel (inv_scale = 1/N, or 1 for 'sum').
    out_ref[...] = (acc * inv_scale)[None, :, :]


def focal_loss(pred, true, gamma=1.5, alpha=0.25, reduction="mean",
               max_tile_rows=_MAX_TILE_ROWS):
    """Focal loss over BCEWithLogits. pred/true: same-shape float arrays.

    bf16/f16 inputs are supported (kernel upcasts to f32), halving HBM bytes
    on this memory-bound kernel; keep `true` in f32 if targets aren't 0/1.
    """
    assert pred.shape == true.shape
    n_elems = pred.size
    lanes = _LANES

    if n_elems % lanes == 0:
        # Metadata-only reshape to a lane-dense slab: no HBM copy, no padding.
        array_rows = n_elems // lanes
        pred2d = pred.reshape(array_rows, lanes)
        true2d = true.reshape(array_rows, lanes)
    else:
        # Tail shorter than one 128-lane row: pad just that row with a
        # zero-contribution sentinel (pred=-1e4, true=0). Only this rare case
        # still materializes a padded copy.
        array_rows = -(-n_elems // lanes)
        pad = array_rows * lanes - n_elems
        pred_f = jnp.concatenate(
            [pred.reshape(-1), jnp.full((pad,), -1e4, dtype=pred.dtype)])
        true_f = jnp.concatenate(
            [true.reshape(-1), jnp.zeros((pad,), dtype=true.dtype)])
        pred2d = pred_f.reshape(array_rows, lanes)
        true2d = true_f.reshape(array_rows, lanes)

    padded_rows = _round_up(array_rows, _ROW_ALIGN)
    if padded_rows > max_tile_rows:
        tile_rows = max_tile_rows                       # multiple of _CHUNK_ROWS
    elif padded_rows >= _SPLIT_ROWS:
        # Big enough to be worth >=2 blocks -> both TensorCores get work.
        tile_rows = _round_up(-(-padded_rows // 2), _CHUNK_ROWS)
    else:
        tile_rows = padded_rows
    num_blocks = -(-array_rows // tile_rows)
    chunk_rows = (_CHUNK_ROWS
                  if (tile_rows % _CHUNK_ROWS == 0 and tile_rows > _CHUNK_ROWS)
                  else tile_rows)
    # Rows past array_rows inside the last block are masked in-kernel.
    needs_mask = (num_blocks * tile_rows != array_rows)

    if reduction == "mean":
        inv_scale = 1.0 / float(n_elems)
    elif reduction == "sum":
        inv_scale = 1.0
    else:
        # TODO(synk): reduction='none' (elementwise output) not implemented in
        # the Pallas path; the standard FocalLoss usage wraps a 'mean' loss.
        raise NotImplementedError("reduction must be 'mean' or 'sum'")

    kernel = functools.partial(
        _focal_kernel, gamma=gamma, alpha=alpha, inv_scale=inv_scale,
        tile_rows=tile_rows, chunk_rows=chunk_rows,
        valid_rows=array_rows, needs_mask=needs_mask)

    partials = pl.pallas_call(
        kernel,
        out_shape=jax.ShapeDtypeStruct((num_blocks, 8, lanes), jnp.float32),
        grid_spec=pltpu.PrefetchScalarGridSpec(
            num_scalar_prefetch=0,
            grid=(num_blocks,),
            in_specs=[
                pl.BlockSpec((tile_rows, lanes), lambda i: (i, 0)),
                pl.BlockSpec((tile_rows, lanes), lambda i: (i, 0)),
            ],
            out_specs=pl.BlockSpec((1, 8, lanes), lambda i: (i, 0, 0)),
        ),
        compiler_params=pltpu.CompilerParams(
            # Fully parallel grid: no cross-step accumulator, so megacore /
            # dual-TC sharding is free.
            dimension_semantics=("parallel",),
            # Safe on v5e (16 MiB scoped default would be too tight for 8192
            # rows), comfortable on v6e, within v7x's 64 MiB physical VMEM.
            vmem_limit_bytes=48 * 1024 * 1024,
        ),
    )(pred2d, true2d)

    # Mean scale already folded in-kernel; only this tiny reduce remains.
    return jnp.sum(partials)


def _focal_ref(pred, true, gamma=1.5, alpha=0.25):
    p = pred.astype(jnp.float32)
    t = true.astype(jnp.float32)
    bce = jnp.maximum(p, 0.0) - p * t + jnp.log1p(jnp.exp(-jnp.abs(p)))
    prob = jax.nn.sigmoid(p)
    p_t = t * prob + (1.0 - t) * (1.0 - prob)
    af = t * alpha + (1.0 - t) * (1.0 - alpha)
    mf = (1.0 - p_t) ** gamma
    return jnp.mean(bce * af * mf)


if __name__ == "__main__":
    key = jax.random.PRNGKey(0)
    k1, k2 = jax.random.split(key)

    # NCHW inputs, small shapes: batch=2, channels=4, spatial=16x16
    pred = jax.random.normal(k1, (2, 4, 16, 16), dtype=jnp.float32)
    true = (jax.random.uniform(k2, (2, 4, 16, 16)) > 0.5).astype(jnp.float32)

    out = focal_loss(pred, true)
    out = jax.block_until_ready(out)

    ref = _focal_ref(pred, true)
    # Tolerance relaxed vs exact math because sigmoid uses the approx vrcp
    # (relative error ~2^-12).
    assert jnp.allclose(out, ref, rtol=2e-3, atol=1e-7), (out, ref)

    print("KERNEL_OK")
</pallas_src>

<mosaic_0001>
module attributes {stable_mosaic.version = 11 : i64} {
  func.func @_focal_kernel(%arg0: i32, %arg1: memref<16x128xf32, #tpu.memory_space<vmem>>, %arg2: memref<16x128xf32, #tpu.memory_space<vmem>>, %arg3: memref<1x8x128xf32, #tpu.memory_space<vmem>>) attributes {dimension_semantics = [#tpu.dimension_semantics<parallel>], iteration_bounds = array<i64: 1>, scalar_prefetch = 0 : i64, scratch_operands = 0 : i64, tpu.core_type = #tpu.core_type<tc>, window_params = [{transform_indices = @transform_0, window_bounds = array<i64: 16, 128>}, {transform_indices = @transform_1, window_bounds = array<i64: 16, 128>}, {transform_indices = @transform_2, window_bounds = array<i64: 1, 8, 128>}]} {
    %cst = arith.constant 0.000000e+00 : f32
    %0 = vector.broadcast %cst : f32 to vector<8x128xf32>
    %c0 = arith.constant 0 : index
    %c0_0 = arith.constant 0 : index
    %1 = vector.load %arg1[%c0, %c0_0] : memref<16x128xf32, #tpu.memory_space<vmem>>, vector<16x128xf32>
    %c0_1 = arith.constant 0 : index
    %c0_2 = arith.constant 0 : index
    %2 = vector.load %arg2[%c0_1, %c0_2] : memref<16x128xf32, #tpu.memory_space<vmem>>, vector<16x128xf32>
    %3 = math.absf %1 : vector<16x128xf32>
    %cst_3 = arith.constant 0.000000e+00 : f32
    %4 = vector.broadcast %cst_3 : f32 to vector<16x128xf32>
    %5 = arith.subf %4, %3 : vector<16x128xf32>
    %6 = math.exp %5 : vector<16x128xf32>
    %cst_4 = arith.constant 0.000000e+00 : f32
    %7 = vector.broadcast %cst_4 : f32 to vector<16x128xf32>
    %8 = arith.maximumf %1, %7 : vector<16x128xf32>
    %9 = arith.mulf %1, %2 : vector<16x128xf32>
    %10 = arith.subf %8, %9 : vector<16x128xf32>
    %11 = math.log1p %6 : vector<16x128xf32>
    %12 = arith.addf %10, %11 : vector<16x128xf32>
    %cst_5 = arith.constant 1.000000e+00 : f32
    %13 = vector.broadcast %cst_5 : f32 to vector<16x128xf32>
    %14 = arith.addf %13, %6 : vector<16x128xf32>
    %15 = tpu.reciprocal %14 {approx = true} : vector<16x128xf32> -> vector<16x128xf32>
    %cst_6 = arith.constant 0.000000e+00 : f32
    %16 = vector.broadcast %cst_6 : f32 to vector<16x128xf32>
    %17 = arith.cmpf oge, %1, %16 : vector<16x128xf32>
    %cst_7 = arith.constant 1.000000e+00 : f32
    %18 = vector.broadcast %cst_7 : f32 to vector<16x128xf32>
    %19 = arith.select %17, %18, %6 : vector<16x128xi1>, vector<16x128xf32>
    %20 = arith.mulf %19, %15 : vector<16x128xf32>
    %cst_8 = arith.constant 2.000000e+00 : f32
    %21 = vector.broadcast %cst_8 : f32 to vector<16x128xf32>
    %22 = arith.mulf %21, %20 : vector<16x128xf32>
    %cst_9 = arith.constant 1.000000e+00 : f32
    %23 = vector.broadcast %cst_9 : f32 to vector<16x128xf32>
    %24 = arith.subf %23, %22 : vector<16x128xf32>
    %25 = arith.mulf %2, %24 : vector<16x128xf32>
    %26 = arith.addf %20, %25 : vector<16x128xf32>
    %cst_10 = arith.constant -5.000000e-01 : f32
    %27 = vector.broadcast %cst_10 : f32 to vector<16x128xf32>
    %28 = arith.mulf %2, %27 : vector<16x128xf32>
    %cst_11 = arith.constant 7.500000e-01 : f32
    %29 = vector.broadcast %cst_11 : f32 to vector<16x128xf32>
    %30 = arith.addf %29, %28 : vector<16x128xf32>
    %31 = math.sqrt %26 : vector<16x128xf32>
    %32 = arith.mulf %26, %31 : vector<16x128xf32>
    %33 = arith.mulf %12, %30 : vector<16x128xf32>
    %34 = arith.mulf %33, %32 : vector<16x128xf32>
    %35 = vector.shape_cast %34 : vector<16x128xf32> to vector<2x8x128xf32>
    %cst_12 = arith.constant dense<0.000000e+00> : vector<8x128xf32>
    %36 = vector.multi_reduction <add>, %35, %cst_12 [0] : vector<2x8x128xf32> to vector<8x128xf32>
    %37 = arith.addf %0, %36 : vector<8x128xf32>
    %cst_13 = arith.constant 4.8828125E-4 : f32
    %38 = vector.broadcast %cst_13 : f32 to vector<8x128xf32>
    %39 = arith.mulf %37, %38 : vector<8x128xf32>
    %40 = vector.shape_cast %39 : vector<8x128xf32> to vector<1x8x128xf32>
    %c0_14 = arith.constant 0 : index
    %c0_15 = arith.constant 0 : index
    %c0_16 = arith.constant 0 : index
    %41 = vector.load %arg3[%c0_14, %c0_15, %c0_16] : memref<1x8x128xf32, #tpu.memory_space<vmem>>, vector<1x8x128xf32>
    tpu.vector_store %arg3[%c0_14, %c0_15, %c0_16], %40 {strides = array<i32>} : memref<1x8x128xf32, #tpu.memory_space<vmem>>, vector<1x8x128xf32>,
    return
  }
  func.func @transform_0(%arg0: i32) -> (i32, i32) {
    %c0_i32 = arith.constant 0 : i32
    %c0_i32_0 = arith.constant 0 : i32
    return %arg0, %c0_i32 : i32, i32
  }
  func.func @transform_1(%arg0: i32) -> (i32, i32) {
    %c0_i32 = arith.constant 0 : i32
    %c0_i32_0 = arith.constant 0 : i32
    return %arg0, %c0_i32 : i32, i32
  }
  func.func @transform_2(%arg0: i32) -> (i32, i32, i32) {
    %c0_i32 = arith.constant 0 : i32
    %c0_i32_0 = arith.constant 0 : i32
    %c0_i32_1 = arith.constant 0 : i32
    return %arg0, %c0_i32, %c0_i32_0 : i32, i32, i32
  }
}

</mosaic_0001>

<llo_original>
// kernel: tpu_custom_call.1
$region0: #{tpu_custom_call.1}
  #allocation0 [shape = 'u32[]', space=smem, size = 0x4, offset = 0x4, fixed_abs, tag = 'smem constant byte address 0x4 - core index']
  #allocation1 [shape = 'u32[144,128]{1,0:T(1,128)}', space=vmem, size = 0x12000, scoped, tag = 'internal scratch']
  %s0 = inlined_call_operand.hbm [shape: f32[16,128], index: 0, kind: input, shape index: {}]
  %s1 = inlined_call_operand.hbm [shape: f32[16,128], index: 1, kind: input, shape index: {}]
  %s2 = inlined_call_operand.hbm [shape: f32[1,8,128], index: 2, kind: output, shape index: {}]
  %s3 = sld [smem:[#allocation0]]
  $region26: #{tpu_custom_call.1} parent=0
    _
  %s5 = ssub.s32 1, %s3
  %s6 = scalar_select 0, %s5, %s3
  $region1: #{tpu_custom_call.1} parent=0
    #allocation2 [shape = 'u8[8192]{0}', space=vmem, size = 0x2000, scoped, tag = 'input window, operand 0, single buffered']
    #allocation3 [shape = 's32[1]{0}', space=sflag, size = 0x4, scoped, tag = 'scoped memory for tpu_custom_call.1']
    #allocation4 [shape = 's32[1]{0}', space=sflag, size = 0x4, scoped, tag = 'scoped memory for tpu_custom_call.1']
    #allocation5 [shape = 'u8[8192]{0}', space=vmem, size = 0x2000, scoped, tag = 'input window, operand 1, single buffered']
    #allocation6 [shape = 's32[1]{0}', space=sflag, size = 0x4, scoped, tag = 'scoped memory for tpu_custom_call.1']
    #allocation7 [shape = 'u8[4096]{0}', space=vmem, size = 0x1000, scoped, tag = 'output window, operand 0, single buffered']
    %7 = vsyncpa [#allocation3], 0
    %8 = vsyncpa [#allocation6], 0
    %9 = vsyncpa [#allocation4], 0
    // Predicated region
    $region2: #{tpu_custom_call.1} parent=1 // pred_check
      _
    $region3: #{tpu_custom_call.1} parent=1 // pred_check_branch
      %11 = sbr.rel (0) target = $region5
    $region4: #{tpu_custom_call.1} parent=1 // pred_region
      %s13 = ssub.s32 256, 256
      %14 = vsyncadd [#allocation3], %s13
      %s15 = sshll.u32 [#allocation2], 4
      %s16 = int_to_ptr.vmem [resolvable:$true] %s15
      %21 = dma.hbm_to_vmem [thread:$0]  %s0, 256, %s16, [#allocation3], 128, 128, 8
    $region5: #{tpu_custom_call.1} parent=1 // pred_fallthru
      _
    // Predicated region
    $region6: #{tpu_custom_call.1} parent=1 // pred_check
      _
    $region7: #{tpu_custom_call.1} parent=1 // pred_check_branch
      %23 = sbr.rel (0) target = $region9
    $region8: #{tpu_custom_call.1} parent=1 // pred_region
      %s25 = ssub.s32 256, 256
      %26 = vsyncadd [#allocation6], %s25
      %s27 = sshll.u32 [#allocation5], 4
      %s28 = int_to_ptr.vmem [resolvable:$true] %s27
      %33 = dma.hbm_to_vmem [thread:$0]  %s1, 256, %s28, [#allocation6], 128, 128, 8
    $region9: #{tpu_custom_call.1} parent=1 // pred_fallthru
      _
    // Predicated region
    $region10: #{tpu_custom_call.1} parent=1 // pred_check
      _
    $region11: #{tpu_custom_call.1} parent=1 // pred_check_branch
      %35 = sbr.rel (0) target = $region13
    $region12: #{tpu_custom_call.1} parent=1 // pred_region
      %36 = dma.done [#allocation3], 256
    $region13: #{tpu_custom_call.1} parent=1 // pred_fallthru
      _
    // Predicated region
    $region14: #{tpu_custom_call.1} parent=1 // pred_check
      _
    $region15: #{tpu_custom_call.1} parent=1 // pred_check_branch
      %38 = sbr.rel (0) target = $region17
    $region16: #{tpu_custom_call.1} parent=1 // pred_region
      %39 = dma.done [#allocation6], 256
    $region17: #{tpu_custom_call.1} parent=1 // pred_fallthru
      _
    %v40 = vld [vmem:[#allocation2] sm:$0xff]
    %v41 = vld [vmem:[#allocation2 + $0x8] sm:$0xff]
    %v42 = vld [vmem:[#allocation5] sm:$0xff]
    %v43 = vld [vmem:[#allocation5 + $0x8] sm:$0xff]
    %v44 = vand.u32 2147483647, %v40
    %v45 = vand.u32 2147483647, %v41
    %v46 = vsub.f32 0.0, %v44
    %v47 = vsub.f32 0.0, %v45
    %v48 = vmul.f32 %v46, 1.442695
    %v49 = vpow.pop %v48
    %v50 = vmul.f32 %v47, 1.442695
    %v51 = vpow.pop %v50
    %v52 = vmax.f32 %v40, 0.0
    %v53 = vmax.f32 %v41, 0.0
    %v54 = vmul.f32 %v40, %v42
    %v55 = vmul.f32 %v41, %v43
    %v56 = vsub.f32 %v52, %v54
    %v57 = vsub.f32 %v53, %v55
    %v58 = vadd.f32 %v49, 1.0
    %v59 = vlog2.pop %v58
    %v60 = vmul.f32 %v59, 0.6931472
    %v61 = vmul.f32 -0.5, %v49
    %v62 = vadd.f32 %v61, 1.0
    %v63 = vmul.f32 %v62, %v49
    %v64 = vand.u32 2147483647, %v49
    %vm65 = vcmp.lt.f32.partialorder %v64, 0.0004427343
    %v66 = vsel %vm65, %v63, %v60
    %v67 = vadd.f32 %v51, 1.0
    %v68 = vlog2.pop %v67
    %v69 = vmul.f32 %v68, 0.6931472
    %v70 = vmul.f32 -0.5, %v51
    %v71 = vadd.f32 %v70, 1.0
    %v72 = vmul.f32 %v71, %v51
    %v73 = vand.u32 2147483647, %v51
    %vm74 = vcmp.lt.f32.partialorder %v73, 0.0004427343
    %v75 = vsel %vm74, %v72, %v69
    %v76 = vadd.f32 %v56, %v66
    %v77 = vadd.f32 %v57, %v75
    %v78 = vadd.f32 %v49, 1.0
    %v79 = vadd.f32 %v51, 1.0
    %v80 = vrcp.pop %v78
    %v81 = vrcp.pop %v79
    %vm82 = vcmp.ge.f32.partialorder %v40, 0.0
    %vm83 = vcmp.ge.f32.partialorder %v41, 0.0
    %v84 = vsel %vm82, 1.0, %v49
    %v85 = vsel %vm83, 1.0, %v51
    %v86 = vmul.f32 %v84, %v80
    %v87 = vmul.f32 %v85, %v81
    %v88 = vmul.f32 %v86, 2.0
    %v89 = vmul.f32 %v87, 2.0
    %v90 = vsub.f32 1.0, %v88
    %v91 = vsub.f32 1.0, %v89
    %v92 = vmul.f32 %v42, %v90
    %v93 = vmul.f32 %v43, %v91
    %v94 = vadd.f32 %v86, %v92
    %v95 = vadd.f32 %v87, %v93
    %v96 = vmul.f32 %v42, -0.5
    %v97 = vmul.f32 %v43, -0.5
    %v98 = vadd.f32 %v96, 0.75
    %v99 = vadd.f32 %v97, 0.75
    %v100 = vrsqrt.pop %v94
    %v101 = vmul.f32 %v94, %v100
    %vm102 = vcmp.eq.f32.partialorder %v94, inf
    %v103 = vsel %vm102, %v94, %v101
    %vm104 = vcmp.eq.f32.partialorder %v94, 0.0
    %v105 = vand.u32 %v94, 2147483648
    %v106 = vsel %vm104, %v105, %v103
    %v107 = vrsqrt.pop %v95
    %v108 = vmul.f32 %v95, %v107
    %vm109 = vcmp.eq.f32.partialorder %v95, inf
    %v110 = vsel %vm109, %v95, %v108
    %vm111 = vcmp.eq.f32.partialorder %v95, 0.0
    %v112 = vand.u32 %v95, 2147483648
    %v113 = vsel %vm111, %v112, %v110
    %v114 = vmul.f32 %v94, %v106
    %v115 = vmul.f32 %v95, %v113
    %v116 = vmul.f32 %v76, %v98
    %v117 = vmul.f32 %v77, %v99
    %v118 = vmul.f32 %v116, %v114
    %v119 = vmul.f32 %v117, %v115
    %v120 = vadd.f32 %v118, %v119
    %v121 = vadd.f32 %v120, 0.0
    %v122 = vmul.f32 %v121, 0.00048828125
    %123 = vst [vmem:[#allocation7] sm:$0xff] %v122
    // Predicated region
    $region18: #{tpu_custom_call.1} parent=1 // pred_check
      _
    $region19: #{tpu_custom_call.1} parent=1 // pred_check_branch
      %125 = sbr.rel (0) target = $region21
    $region20: #{tpu_custom_call.1} parent=1 // pred_region
      %s127 = ssub.s32 128, 128
      %128 = vsyncadd [#allocation4], %s127
      %s130 = sshll.u32 [#allocation7], 4
      %s131 = int_to_ptr.vmem [resolvable:$true] %s130
      %133 = dma.vmem_to_hbm [thread:$0]  %s131, 128, %s2, [#allocation4]
    $region21: #{tpu_custom_call.1} parent=1 // pred_fallthru
      _
    // Predicated region
    $region22: #{tpu_custom_call.1} parent=1 // pred_check
      _
    $region23: #{tpu_custom_call.1} parent=1 // pred_check_branch
      %135 = sbr.rel (0) target = $region25
    $region24: #{tpu_custom_call.1} parent=1 // pred_region
      %136 = dma.done [#allocation4], 128
    $region25: #{tpu_custom_call.1} parent=1 // pred_fallthru
      _
    %137 = vsyncpa [#allocation3], 1
    %138 = vsyncpa [#allocation6], 1
    %139 = vsyncpa [#allocation4], 1

</llo_original>
